<compile_context>
chip_gen: v7x
topology: tpu7x:2x2x1
jax: 0.10.0
libtpu: 0.0.40
codegen_flags: <defaults>
</compile_context>

<pallas_src>
import functools

import jax
import jax.numpy as jnp
from jax.experimental import pallas as pl
from jax.experimental.pallas import tpu as pltpu


def _round_up(x: int, m: int) -> int:
    return (x + m - 1) // m * m


def _sublane_pack(dtype) -> int:
    # sublane packing of the MXU operand dtype: f32 -> 8, bf16 -> 16, 8-bit -> 32
    return {4: 8, 2: 16, 1: 32}[jnp.dtype(dtype).itemsize]


def _select_tiles(B, N, K, compute_dtype):
    tm = min(512, _round_up(B, _sublane_pack(compute_dtype)))
    tn = min(512, _round_up(N, 128))
    tk = min(1024, _round_up(K, 128))
    Mp, Np, Kp = _round_up(B, tm), _round_up(N, tn), _round_up(K, tk)
    # v7x megacore: if the parallel (i, j) axes collapse to a single program
    # while K still has multiple steps, split N so both TensorCores get a tile.
    if Mp == tm and Np == tn and Kp > tk and tn >= 256:
        tn = _round_up(tn // 2, 128)
        Np = _round_up(N, tn)
    return tm, tn, tk, Mp, Np, Kp


def _den_kernel_tiled(x_ref, w_ref, b_ref, o_ref, acc_ref):
    # x_ref:   (tm, tk)  activations tile
    # w_ref:   (tk, tn)  weight tile, already transposed to [K, N] layout
    # b_ref:   (1, tn)   bias tile (output coordinate frame), f32
    # o_ref:   (tm, tn)  output tile
    # acc_ref: (tm, tn)  f32 accumulator, resident across the K grid axis
    k = pl.program_id(2)

    @pl.when(k == 0)
    def _():
        acc_ref[...] = jnp.zeros_like(acc_ref)

    acc_ref[...] += jnp.dot(x_ref[...], w_ref[...],
                            preferred_element_type=jnp.float32)

    @pl.when(k == pl.num_programs(2) - 1)
    def _():
        # Single epilogue pass per output tile: bias add + ReLU + one store.
        o_ref[...] = jnp.maximum(acc_ref[...] + b_ref[...], 0.0).astype(o_ref.dtype)


def _den_kernel_whole(x_ref, w_ref, b_ref, o_ref):
    # Whole-problem-in-one-tile fast path (no grid, no padding).
    acc = jnp.dot(x_ref[...], w_ref[...], preferred_element_type=jnp.float32)
    o_ref[...] = jnp.maximum(acc + b_ref[...], 0.0).astype(o_ref.dtype)


@functools.partial(jax.jit, static_argnames=("compute_dtype",))
def den_layer_forward(x, weight, bias, *, compute_dtype=jnp.bfloat16):
    """Equivalent of DENLayer.forward: relu(F.linear(x, weight, bias)).

    x:      [B, in_features]
    weight: [out_features, in_features]  (PyTorch layout)
    bias:   [out_features]
    compute_dtype: MXU operand dtype (default bfloat16; accumulation stays f32).
    returns [B, out_features] in x.dtype
    """
    B, K = x.shape
    N, Kw = weight.shape
    assert Kw == K, "weight in_features mismatch"
    out_dtype = x.dtype
    op_bytes = jnp.dtype(compute_dtype).itemsize
    out_bytes = jnp.dtype(out_dtype).itemsize

    # TODO(synk): for repeated calls with a fixed weight, the transpose/cast
    # (and pad) below should be cached at parameter-setup time, not per call.
    w_t = weight.astype(compute_dtype).T          # [K, N], one-time transpose
    xc = x.astype(compute_dtype)
    b_row = bias.reshape(1, N).astype(jnp.float32)

    # ---- single-tile fast path: no padding, whole arrays resident in VMEM ----
    if B <= 512 and N <= 512 and K <= 1024:
        return pl.pallas_call(
            _den_kernel_whole,
            out_shape=jax.ShapeDtypeStruct((B, N), out_dtype),
            in_specs=[pl.BlockSpec(memory_space=pltpu.MemorySpace.VMEM)] * 3,
            out_specs=pl.BlockSpec(memory_space=pltpu.MemorySpace.VMEM),
            cost_estimate=pl.CostEstimate(
                flops=2 * B * N * K,
                transcendentals=0,
                bytes_accessed=(B * K + K * N) * op_bytes + N * 4 + B * N * out_bytes,
            ),
        )(xc, w_t, b_row)

    # ---- general tiled path (output-stationary (M, N, K) grid) ----
    tm, tn, tk, Mp, Np, Kp = _select_tiles(B, N, K, compute_dtype)
    if (Mp, Kp) != (B, K):
        xc = jnp.pad(xc, ((0, Mp - B), (0, Kp - K)))
    if (Kp, Np) != (K, N):
        w_t = jnp.pad(w_t, ((0, Kp - K), (0, Np - N)))
    if Np != N:
        b_row = jnp.pad(b_row, ((0, 0), (0, Np - N)))

    grid = (Mp // tm, Np // tn, Kp // tk)
    out = pl.pallas_call(
        _den_kernel_tiled,
        out_shape=jax.ShapeDtypeStruct((Mp, Np), out_dtype),
        grid_spec=pltpu.PrefetchScalarGridSpec(
            num_scalar_prefetch=0,
            grid=grid,
            in_specs=[
                pl.BlockSpec((tm, tk), lambda i, j, k: (i, k)),   # x tile
                pl.BlockSpec((tk, tn), lambda i, j, k: (k, j)),   # W^T tile
                pl.BlockSpec((1, tn), lambda i, j, k: (0, j)),    # bias tile
            ],
            out_specs=pl.BlockSpec((tm, tn), lambda i, j, k: (i, j)),
            scratch_shapes=[pltpu.VMEM((tm, tn), jnp.float32)],
        ),
        compiler_params=pltpu.CompilerParams(
            dimension_semantics=("parallel", "parallel", "arbitrary"),
            vmem_limit_bytes=48 * 1024 * 1024,   # within v7x's 64 MiB per-TC VMEM
        ),
        cost_estimate=pl.CostEstimate(
            flops=2 * Mp * Np * Kp,
            transcendentals=0,
            bytes_accessed=Mp * Kp * op_bytes * (Np // tn)      # x re-streamed per N tile
            + Kp * Np * op_bytes * (Mp // tm)                   # W re-streamed per M tile
            + Np * 4
            + Mp * Np * out_bytes,
        ),
    )(xc, w_t, b_row)

    if (Mp, Np) != (B, N):
        out = out[:B, :N]
    return out


if __name__ == "__main__":
    key = jax.random.PRNGKey(0)
    hi = jax.lax.Precision.HIGHEST

    # ---- small demo mirroring the module init (weight ~ randn*0.01, bias = 0)
    #      -> exercises the single-tile fast path
    kx, kw = jax.random.split(key)
    batch, in_features, out_features = 8, 32, 64
    x = jax.random.normal(kx, (batch, in_features), dtype=jnp.float32)
    weight = jax.random.normal(kw, (out_features, in_features), dtype=jnp.float32) * 0.01
    bias = jnp.zeros((out_features,), dtype=jnp.float32)
    ref = jnp.maximum(jnp.dot(x, weight.T, precision=hi) + bias, 0.0)

    out_f32 = jax.block_until_ready(
        den_layer_forward(x, weight, bias, compute_dtype=jnp.float32))
    assert out_f32.shape == (batch, out_features)
    assert jnp.allclose(out_f32, ref, atol=1e-5, rtol=1e-5)

    out_bf16 = jax.block_until_ready(den_layer_forward(x, weight, bias))  # default bf16 operands
    assert jnp.allclose(out_bf16, ref, atol=1e-2, rtol=2e-2)

    # ---- larger shape exercising the tiled grid with N and K padding ----
    k2x, k2w, k2b = jax.random.split(jax.random.PRNGKey(0), 3)
    B2, K2, N2 = 24, 1536, 768
    x2 = jax.random.normal(k2x, (B2, K2), dtype=jnp.float32)
    w2 = jax.random.normal(k2w, (N2, K2), dtype=jnp.float32) * 0.01
    b2 = jax.random.normal(k2b, (N2,), dtype=jnp.float32) * 0.01
    ref2 = jnp.maximum(jnp.dot(x2, w2.T, precision=hi) + b2, 0.0)

    out2_f32 = jax.block_until_ready(
        den_layer_forward(x2, w2, b2, compute_dtype=jnp.float32))
    assert out2_f32.shape == (B2, N2)
    assert jnp.allclose(out2_f32, ref2, atol=1e-3, rtol=1e-3)

    out2 = jax.block_until_ready(den_layer_forward(x2, w2, b2))  # bf16 default
    assert jnp.allclose(out2, ref2, atol=5e-2, rtol=5e-2)

    # ---- small-B / large-K shape exercising the megacore N-split heuristic ----
    k3x, k3w = jax.random.split(jax.random.PRNGKey(1))
    B3, K3, N3 = 16, 2048, 512
    x3 = jax.random.normal(k3x, (B3, K3), dtype=jnp.float32)
    w3 = jax.random.normal(k3w, (N3, K3), dtype=jnp.float32) * 0.01
    b3 = jnp.zeros((N3,), dtype=jnp.float32)
    ref3 = jnp.maximum(jnp.dot(x3, w3.T, precision=hi) + b3, 0.0)
    out3 = jax.block_until_ready(den_layer_forward(x3, w3, b3))
    assert jnp.allclose(out3, ref3, atol=5e-2, rtol=5e-2)

    # last_activation in the PyTorch module is just a detached copy of `out`;
    # the returned array itself serves that role (no in-kernel state needed).
    # TODO(synk): expand_den_layer / conditional_expand / get_saturation /
    # active_neurons are host-side parameter management, not kernel work.
    print("KERNEL_OK")
</pallas_src>

<mosaic_0001>
module attributes {stable_mosaic.version = 11 : i64} {
  func.func @_den_kernel_whole(%arg0: memref<8x32xf32, #tpu.memory_space<vmem>>, %arg1: memref<32x64xf32, #tpu.memory_space<vmem>>, %arg2: memref<1x64xf32, #tpu.memory_space<vmem>>, %arg3: memref<8x64xf32, #tpu.memory_space<vmem>>) attributes {dimension_semantics = [], scalar_prefetch = 0 : i64, scratch_operands = 0 : i64, tpu.core_type = #tpu.core_type<tc>} {
    %c0 = arith.constant 0 : index
    %c0_0 = arith.constant 0 : index
    %0 = vector.load %arg0[%c0, %c0_0] : memref<8x32xf32, #tpu.memory_space<vmem>>, vector<8x32xf32>
    %c0_1 = arith.constant 0 : index
    %c0_2 = arith.constant 0 : index
    %1 = vector.load %arg1[%c0_1, %c0_2] : memref<32x64xf32, #tpu.memory_space<vmem>>, vector<32x64xf32>
    %cst = arith.constant dense<0.000000e+00> : vector<8x64xf32>
    %2 = tpu.matmul %0, %1, %cst {dimension_numbers = #tpu.dot_dimension_numbers<[1], [0], [0], [1], [0, 0, 1, 1], [], []>} : vector<8x32xf32>, vector<32x64xf32>, vector<8x64xf32> -> vector<8x64xf32>
    %c0_3 = arith.constant 0 : index
    %c0_4 = arith.constant 0 : index
    %3 = vector.load %arg2[%c0_3, %c0_4] : memref<1x64xf32, #tpu.memory_space<vmem>>, vector<1x64xf32>
    %4 = vector.broadcast %3 : vector<1x64xf32> to vector<8x64xf32>
    %5 = arith.addf %2, %4 : vector<8x64xf32>
    %cst_5 = arith.constant 0.000000e+00 : f32
    %6 = vector.broadcast %cst_5 : f32 to vector<8x64xf32>
    %7 = arith.maximumf %5, %6 : vector<8x64xf32>
    %c0_6 = arith.constant 0 : index
    %c0_7 = arith.constant 0 : index
    %8 = vector.load %arg3[%c0_6, %c0_7] : memref<8x64xf32, #tpu.memory_space<vmem>>, vector<8x64xf32>
    tpu.vector_store %arg3[%c0_6, %c0_7], %7 {strides = array<i32>} : memref<8x64xf32, #tpu.memory_space<vmem>>, vector<8x64xf32>,
    return
  }
}

</mosaic_0001>

<llo_original>
// kernel: den_layer_forward.1
$region0: #{den_layer_forward.1}
  #allocation0 [shape = 'u32[]', space=smem, size = 0x4, offset = 0x4, fixed_abs, tag = 'smem constant byte address 0x4 - core index']
  #allocation1 [shape = 'u32[144,128]{1,0:T(1,128)}', space=vmem, size = 0x12000, scoped, tag = 'internal scratch']
  %s0 = inlined_call_operand.hbm [shape: f32[8,32], index: 0, kind: input, shape index: {}]
  %s1 = inlined_call_operand.hbm [shape: f32[32,64], index: 1, kind: input, shape index: {}]
  %s2 = inlined_call_operand.vmem [shape: f32[1,64], index: 2, kind: input, shape index: {}]
  %s3 = inlined_call_operand.hbm [shape: f32[8,64], index: 3, kind: output, shape index: {}]
  %s4 = sld [smem:[#allocation0]]
  $region30: #{den_layer_forward.1} parent=0
    _
  %s6 = ssub.s32 1, %s4
  %s7 = scalar_select 0, %s6, %s4
  $region1: #{den_layer_forward.1} parent=0
    #allocation2 [shape = 'u8[4096]{0}', space=vmem, size = 0x1000, scoped, tag = 'input window, operand 0, single buffered']
    #allocation3 [shape = 's32[1]{0}', space=sflag, size = 0x4, scoped, tag = 'scoped memory for den_layer_forward.1']
    #allocation4 [shape = 's32[1]{0}', space=sflag, size = 0x4, scoped, tag = 'scoped memory for den_layer_forward.1']
    #allocation5 [shape = 'u8[16384]{0}', space=vmem, size = 0x4000, scoped, tag = 'input window, operand 1, single buffered']
    #allocation6 [shape = 's32[1]{0}', space=sflag, size = 0x4, scoped, tag = 'scoped memory for den_layer_forward.1']
    #allocation7 [shape = 'u8[4096]{0}', space=vmem, size = 0x1000, scoped, tag = 'output window, operand 0, single buffered']
    %8 = vsyncpa [#allocation3], 0
    %9 = vsyncpa [#allocation6], 0
    %10 = vsyncpa [#allocation4], 0
    // Predicated region
    $region2: #{den_layer_forward.1} parent=1 // pred_check
      _
    $region3: #{den_layer_forward.1} parent=1 // pred_check_branch
      %12 = sbr.rel (0) target = $region5
    $region4: #{den_layer_forward.1} parent=1 // pred_region
      %s14 = ssub.s32 128, 128
      %15 = vsyncadd [#allocation3], %s14
      %s17 = sshll.u32 [#allocation2], 4
      %s18 = int_to_ptr.vmem [resolvable:$true] %s17
      %20 = dma.hbm_to_vmem [thread:$0]  %s0, 128, %s18, [#allocation3]
    $region5: #{den_layer_forward.1} parent=1 // pred_fallthru
      _
    // Predicated region
    $region6: #{den_layer_forward.1} parent=1 // pred_check
      _
    $region7: #{den_layer_forward.1} parent=1 // pred_check_branch
      %22 = sbr.rel (0) target = $region9
    $region8: #{den_layer_forward.1} parent=1 // pred_region
      %s24 = ssub.s32 512, 512
      %25 = vsyncadd [#allocation6], %s24
      %s26 = sshll.u32 [#allocation5], 4
      %s27 = int_to_ptr.vmem [resolvable:$true] %s26
      %32 = dma.hbm_to_vmem [thread:$0]  %s1, 512, %s27, [#allocation6], 128, 128, 8
    $region9: #{den_layer_forward.1} parent=1 // pred_fallthru
      _
    // Predicated region
    $region10: #{den_layer_forward.1} parent=1 // pred_check
      _
    $region11: #{den_layer_forward.1} parent=1 // pred_check_branch
      %34 = sbr.rel (0) target = $region13
    $region12: #{den_layer_forward.1} parent=1 // pred_region
      _
    $region13: #{den_layer_forward.1} parent=1 // pred_fallthru
      _
    // Predicated region
    $region14: #{den_layer_forward.1} parent=1 // pred_check
      _
    $region15: #{den_layer_forward.1} parent=1 // pred_check_branch
      %36 = sbr.rel (0) target = $region17
    $region16: #{den_layer_forward.1} parent=1 // pred_region
      %37 = dma.done [#allocation3], 128
    $region17: #{den_layer_forward.1} parent=1 // pred_fallthru
      _
    // Predicated region
    $region18: #{den_layer_forward.1} parent=1 // pred_check
      _
    $region19: #{den_layer_forward.1} parent=1 // pred_check_branch
      %39 = sbr.rel (0) target = $region21
    $region20: #{den_layer_forward.1} parent=1 // pred_region
      %40 = dma.done [#allocation6], 512
    $region21: #{den_layer_forward.1} parent=1 // pred_fallthru
      _
    %v41 = vld [vmem:[#allocation2] sm:$0xff]
    %v42 = vld [vmem:[#allocation5] sm:$0xff]
    %v43 = vld [vmem:[#allocation5 + $0x8] sm:$0xff]
    %v44 = vld [vmem:[#allocation5 + $0x10] sm:$0xff]
    %v45 = vld [vmem:[#allocation5 + $0x18] sm:$0xff]
    %v46 = vld [vmem:[%s2] sm:$0x1]
    %v48 = vlaneseq
    %v49 = vshrl.u32 %v48, 7
    %v50 = vsub.s32 0, %v49
    %v51 = vrot.slane %v46, %v50
    %vm53 = vcmask 261120
    %v55 = vsel %vm53, %v41, 0
    %57 = vmatprep.subr.mxu0 0.0
    %58 = vmatpush1.msra.mxu0 %v42
    %59 = vmatprep.subr.mxu0 0.0
    %60 = vmatpush1.msra.mxu0 %v43
    %61 = vmatprep.subr.mxu0 0.0
    %62 = vmatpush1.msra.mxu0 %v44
    %63 = vmatprep.subr.mxu0 0.0
    %64 = vmatpush1.msra.mxu0 %v45
    %65 = vmatprep.subr.mxu0 0.0
    %66 = vmatpush1.msra.mxu0 0.0
    %67 = vmatprep.subr.mxu0 0.0
    %68 = vmatpush1.msra.mxu0 0.0
    %69 = vmatprep.subr.mxu0 0.0
    %70 = vmatpush1.msra.mxu0 0.0
    %71 = vmatprep.subr.mxu0 0.0
    %72 = vmatpush1.msra.mxu0 0.0
    %73 = vmatprep.subr.mxu0 0.0
    %74 = vmatpush1.msra.mxu0 0.0
    %75 = vmatprep.subr.mxu0 0.0
    %76 = vmatpush1.msra.mxu0 0.0
    %77 = vmatprep.subr.mxu0 0.0
    %78 = vmatpush1.msra.mxu0 0.0
    %79 = vmatprep.subr.mxu0 0.0
    %80 = vmatpush1.msra.mxu0 0.0
    %81 = vmatprep.subr.mxu0 0.0
    %82 = vmatpush1.msra.mxu0 0.0
    %83 = vmatprep.subr.mxu0 0.0
    %84 = vmatpush1.msra.mxu0 0.0
    %85 = vmatprep.subr.mxu0 0.0
    %86 = vmatpush1.msra.mxu0 0.0
    %87 = vmatprep.subr.mxu0 0.0
    %88 = vmatpush1.msra.mxu0 0.0
    %89 = vmatprep.subr.mxu0 0.0
    %90 = vmatpush1.msra.mxu0 0.0
    %91 = vmatprep.subr.mxu0 0.0
    %92 = vmatpush1.msra.mxu0 0.0
    %93 = vmatprep.subr.mxu0 0.0
    %94 = vmatpush1.msra.mxu0 0.0
    %95 = vmatprep.subr.mxu0 0.0
    %96 = vmatpush1.msra.mxu0 0.0
    %97 = vmatprep.subr.mxu0 0.0
    %98 = vmatpush1.msra.mxu0 0.0
    %99 = vmatprep.subr.mxu0 0.0
    %100 = vmatpush1.msra.mxu0 0.0
    %101 = vmatprep.subr.mxu0 0.0
    %102 = vmatpush1.msra.mxu0 0.0
    %103 = vmatprep.subr.mxu0 0.0
    %104 = vmatpush1.msra.mxu0 0.0
    %105 = vmatprep.subr.mxu0 0.0
    %106 = vmatpush1.msra.mxu0 0.0
    %107 = vmatprep.subr.mxu0 0.0
    %108 = vmatpush1.msra.mxu0 0.0
    %109 = vmatprep.subr.mxu0 0.0
    %110 = vmatpush1.msra.mxu0 0.0
    %111 = vmatprep.subr.mxu0 0.0
    %112 = vmatpush1.msra.mxu0 0.0
    %113 = vmatprep.subr.mxu0 0.0
    %114 = vmatpush1.msra.mxu0 0.0
    %115 = vmatprep.subr.mxu0 0.0
    %116 = vmatpush1.msra.mxu0 0.0
    %117 = vmatprep.subr.mxu0 0.0
    %118 = vmatpush1.msra.mxu0 0.0
    %119 = vmatprep.subr.mxu0 0.0
    %120 = vmatpush1.msra.mxu0 0.0
    %121 = vmatprep.mubr.f32.mxu0 0.0
    %122 = vmatmul.mubr.f32.gmra.mrb[0].mxu0 %v55
    %v123 = vpop.f32.mrb[0].mxu0
    %v124 = vadd.f32 %v51, %v123
    %v125 = vpop.f32.mrb[0].mxu0
    %126 = vdwg.mxu0
    %v127 = vmax.f32 %v124, 0.0
    %vm128 = vcmask 523264
    %129 = vst.msk [vmem:[#allocation7] sm:$0xff] %vm128, %v127
    // Predicated region
    $region22: #{den_layer_forward.1} parent=1 // pred_check
      _
    $region23: #{den_layer_forward.1} parent=1 // pred_check_branch
      %131 = sbr.rel (0) target = $region25
    $region24: #{den_layer_forward.1} parent=1 // pred_region
      %s133 = ssub.s32 128, 128
      %134 = vsyncadd [#allocation4], %s133
      %s136 = sshll.u32 [#allocation7], 4
      %s137 = int_to_ptr.vmem [resolvable:$true] %s136
      %139 = dma.vmem_to_hbm [thread:$0]  %s137, 128, %s3, [#allocation4]
    $region25: #{den_layer_forward.1} parent=1 // pred_fallthru
      _
    // Predicated region
    $region26: #{den_layer_forward.1} parent=1 // pred_check
      _
    $region27: #{den_layer_forward.1} parent=1 // pred_check_branch
      %141 = sbr.rel (0) target = $region29
    $region28: #{den_layer_forward.1} parent=1 // pred_region
      %142 = dma.done [#allocation4], 128
    $region29: #{den_layer_forward.1} parent=1 // pred_fallthru
      _
    %143 = vsyncpa [#allocation3], 1
    %144 = vsyncpa [#allocation6], 1
    %145 = vsyncpa [#allocation4], 1

</llo_original>
